<compile_context>
chip_gen: v5e
topology: v5e:2x2
jax: 0.10.0
libtpu: 0.0.40
codegen_flags: <defaults>
</compile_context>

<pallas_src>
from functools import partial

import jax
import jax.numpy as jnp
from jax.experimental import pallas as pl
from jax.experimental.pallas import tpu as pltpu


# ---------------------------------------------------------------------------
# Kernel
# ---------------------------------------------------------------------------
def _make_fused_basic_block_kernel(n_blk, H, WC):
    """Fused BasicBlock forward for n_blk images per grid step.

    Refs (lane dim = w*C + c, lane-dense since WC is a multiple of 128):
      x_ref  : (n_blk, H, WC)    bf16   input (also the identity residual)
      w1_ref : (3*WC, WC)        bf16   conv1 band weights (BN1 scale folded),
                                        rows stacked [dy=0 | dy=1 | dy=2]
      w2_ref : (3*WC, WC)        bf16   conv2 band weights (BN2 scale folded)
      b_ref  : (2, WC)           f32    [bn1 shift ; bn2 shift], lane-tiled
      o_ref  : (n_blk, H, WC)    bf16
    """
    M = n_blk * H

    def kernel(x_ref, w1_ref, w2_ref, b_ref, o_ref):
        x3 = x_ref[...]                       # (n_blk, H, WC) bf16
        bias = b_ref[...]                     # (2, WC) f32
        b1 = bias[0:1, :]
        b2 = bias[1:2, :]

        def taps_lhs(a):
            # a: (n_blk, H, WC).  Build [row(h-1) | row(h) | row(h+1)] along
            # the lane axis with per-image zero padding in H, so a 3x3 'SAME'
            # conv becomes ONE (M, 3*WC) @ (3*WC, WC) MXU dot (the dx taps and
            # W-direction padding are already folded into the band weights).
            z = jnp.zeros_like(a[:, :1, :])
            dn = jnp.concatenate([z, a[:, :-1, :]], axis=1)   # row h <- h-1
            up = jnp.concatenate([a[:, 1:, :], z], axis=1)    # row h <- h+1
            return jnp.concatenate([dn, a, up], axis=-1).reshape(M, 3 * WC)

        # conv1 (BN1 scale folded into weights) -> + shift -> LeakyReLU(0.1)
        h = jnp.dot(taps_lhs(x3), w1_ref[...],
                    preferred_element_type=jnp.float32) + b1
        h = jnp.where(h >= 0.0, h, 0.1 * h)

        # conv2 (BN2 scale folded) -> + shift -> + identity -> LeakyReLU(0.1)
        h3 = h.reshape(n_blk, H, WC).astype(jnp.bfloat16)
        o = (jnp.dot(taps_lhs(h3), w2_ref[...],
                     preferred_element_type=jnp.float32)
             + b2 + x3.reshape(M, WC).astype(jnp.float32))
        o = jnp.where(o >= 0.0, o, 0.1 * o)

        o_ref[...] = o.reshape(n_blk, H, WC).astype(o_ref.dtype)

    return kernel


# ---------------------------------------------------------------------------
# Parameter preparation (done once, outside the jitted forward)
# ---------------------------------------------------------------------------
def _band_weights(w_hwio, W):
    """(3,3,Cin,Cout) conv weights -> (3, W*Cin, W*Cout) block-band matrices.

    band[dy][wi*Cin+ci, wo*Cout+co] = w[dy, wi-wo+1, ci, co] (0 elsewhere), so
    `x_row(h+dy-1) @ band[dy]` summed over dy is the 3x3 'SAME' conv with the
    W-direction zero padding built into the band structure.
    """
    kh, kw, Cin, Cout = w_hwio.shape
    mats = []
    for dy in range(kh):
        acc = jnp.zeros((W, Cin, W, Cout), w_hwio.dtype)
        for dx in range(kw):
            # sel[wi, wo] = 1  iff  wi == wo + dx - 1
            sel = jnp.eye(W, W, k=1 - dx, dtype=w_hwio.dtype)
            acc = acc + sel[:, None, :, None] * w_hwio[dy, dx][None, :, None, :]
        mats.append(acc.reshape(W * Cin, W * Cout))
    return jnp.stack(mats, axis=0)


def init_basic_block_params(key, in_planes, planes):
    """Deterministic init matching the PyTorch module (inference-mode BN)."""
    k1, k2 = jax.random.split(key, 2)
    std = jnp.sqrt(2.0 / (3 * 3 * planes))            # conv2d helper init
    w1 = std * jax.random.normal(k1, (3, 3, in_planes, planes), jnp.float32)
    w2 = std * jax.random.normal(k2, (3, 3, planes, planes), jnp.float32)

    # BatchNorm2d defaults: gamma=1, beta=0, running_mean=0, running_var=1.
    eps = 1e-5
    gamma = jnp.ones((planes,), jnp.float32)
    beta = jnp.zeros((planes,), jnp.float32)
    r_mean = jnp.zeros((planes,), jnp.float32)
    r_var = jnp.ones((planes,), jnp.float32)
    scale = gamma / jnp.sqrt(r_var + eps)
    shift = beta - r_mean * scale
    return dict(w1=w1, w2=w2, s1=scale, b1=shift, s2=scale, b2=shift)


def prepare_block_operands(params, W):
    """Fold BN scale into the weights, build stacked bf16 band matrices, and
    pack the two BN shifts into one lane-tiled (2, W*C) f32 operand."""
    w1 = params["w1"] * params["s1"][None, None, None, :]   # fold in f32
    w2 = params["w2"] * params["s2"][None, None, None, :]
    w1b = _band_weights(w1, W)                               # (3, WC, WC)
    w2b = _band_weights(w2, W)
    WC = w1b.shape[-1]
    w1s = w1b.reshape(3 * WC, WC).astype(jnp.bfloat16)       # [dy0|dy1|dy2]
    w2s = w2b.reshape(3 * WC, WC).astype(jnp.bfloat16)
    b1 = jnp.tile(params["b1"].astype(jnp.float32), W)
    b2 = jnp.tile(params["b2"].astype(jnp.float32), W)
    bias = jnp.stack([b1, b2], axis=0)                       # (2, WC) f32
    return dict(w1=w1s, w2=w2s, bias=bias)


def _pick_n_blk(N, H, m_target=256):
    """Largest N_blk (divisor of N) with N_blk*H <= m_target, preferring to
    keep >= 2 grid steps (v7x has two TensorCores)."""
    divs = [d for d in range(1, N + 1) if N % d == 0 and d * H <= m_target]
    if not divs:
        return 1
    pref = [d for d in divs if N // d >= 2] or divs
    return max(pref)


# ---------------------------------------------------------------------------
# Forward
# ---------------------------------------------------------------------------
def basic_block_forward_nhwc(x_nhwc, ops, n_blk):
    """x_nhwc: (N,H,W,C); identity-shortcut BasicBlock (stride=1, Cin==Cout)."""
    N, H, W, C = x_nhwc.shape
    WC = W * C                                    # 16 * 8 = 128 -> lane dense
    x_flat = x_nhwc.astype(jnp.bfloat16).reshape(N, H, WC)   # free reshape

    kernel = _make_fused_basic_block_kernel(n_blk, H, WC)
    out_flat = pl.pallas_call(
        kernel,
        out_shape=jax.ShapeDtypeStruct((N, H, WC), jnp.bfloat16),
        grid=(N // n_blk,),
        in_specs=[
            pl.BlockSpec((n_blk, H, WC), lambda n: (n, 0, 0)),     # x
            pl.BlockSpec((3 * WC, WC), lambda n: (0, 0)),          # w1 (band)
            pl.BlockSpec((3 * WC, WC), lambda n: (0, 0)),          # w2 (band)
            pl.BlockSpec((2, WC), lambda n: (0, 0)),               # bn shifts
        ],
        out_specs=pl.BlockSpec((n_blk, H, WC), lambda n: (n, 0, 0)),
        compiler_params=pltpu.CompilerParams(
            dimension_semantics=("parallel",),    # v7x: shard batch on 2 TCs
            vmem_limit_bytes=32 * 1024 * 1024),   # explicit (v5e default 16MiB)
    )(x_flat, ops["w1"], ops["w2"], ops["bias"])
    return out_flat.reshape(N, H, W, C)


@partial(jax.jit, static_argnums=(2,))
def basic_block_forward(x_nchw, ops, n_blk):
    # PyTorch NCHW at the API boundary; kernel works NHWC / lane-flattened.
    x = jnp.transpose(x_nchw, (0, 2, 3, 1))
    y = basic_block_forward_nhwc(x, ops, n_blk)
    return jnp.transpose(y, (0, 3, 1, 2))


# ---------------------------------------------------------------------------
# Pure-JAX reference (mirrors the kernel's bf16-operand / f32-accumulate math)
# ---------------------------------------------------------------------------
def _reference_forward(x_nchw, params):
    x = jnp.transpose(x_nchw, (0, 2, 3, 1)).astype(jnp.bfloat16)

    def conv(inp, w):
        return jax.lax.conv_general_dilated(
            inp, w.astype(jnp.bfloat16), window_strides=(1, 1),
            padding=((1, 1), (1, 1)),
            dimension_numbers=("NHWC", "HWIO", "NHWC"),
            preferred_element_type=jnp.float32)

    def lrelu(v):
        return jnp.where(v >= 0.0, v, 0.1 * v)

    h = lrelu(conv(x, params["w1"]) * params["s1"] + params["b1"])
    o = (conv(h.astype(jnp.bfloat16), params["w2"]) * params["s2"]
         + params["b2"] + x.astype(jnp.float32))
    o = lrelu(o).astype(jnp.bfloat16)
    return jnp.transpose(o, (0, 3, 1, 2))


if __name__ == "__main__":
    key = jax.random.PRNGKey(0)
    k_x, k_p = jax.random.split(key)

    # stride == 1, in_planes == planes -> identity shortcut; W*C == 128.
    N, C, H, W = 16, 8, 16, 16
    x = jax.random.normal(k_x, (N, C, H, W), jnp.float32)
    params = init_basic_block_params(k_p, in_planes=C, planes=C)
    ops = prepare_block_operands(params, W)

    n_blk = _pick_n_blk(N, H)                 # -> 8 images/step, M = 128, grid=2
    out = jax.block_until_ready(basic_block_forward(x, ops, n_blk))

    ref = _reference_forward(x, params)
    out_f = out.astype(jnp.float32)
    ref_f = ref.astype(jnp.float32)
    if not jnp.allclose(out_f, ref_f, atol=3e-2, rtol=3e-2):
        err = float(jnp.max(jnp.abs(out_f - ref_f)))
        raise AssertionError(
            f"Pallas BasicBlock output mismatch vs JAX reference (max err {err})")

    print("KERNEL_OK")
</pallas_src>

<mosaic_0001>
module attributes {stable_mosaic.version = 11 : i64} {
  func.func @kernel(%arg0: i32, %arg1: memref<8x16x128xbf16, #tpu.memory_space<vmem>>, %arg2: memref<384x128xbf16, #tpu.memory_space<vmem>>, %arg3: memref<384x128xbf16, #tpu.memory_space<vmem>>, %arg4: memref<2x128xf32, #tpu.memory_space<vmem>>, %arg5: memref<8x16x128xbf16, #tpu.memory_space<vmem>>) attributes {dimension_semantics = [#tpu.dimension_semantics<parallel>], iteration_bounds = array<i64: 2>, scalar_prefetch = 0 : i64, scratch_operands = 0 : i64, tpu.core_type = #tpu.core_type<tc>, window_params = [{transform_indices = @transform_0, window_bounds = array<i64: 8, 16, 128>}, {pipeline_mode = #tpu.pipeline_mode<synchronous>, transform_indices = @transform_1, window_bounds = array<i64: 384, 128>}, {pipeline_mode = #tpu.pipeline_mode<synchronous>, transform_indices = @transform_2, window_bounds = array<i64: 384, 128>}, {pipeline_mode = #tpu.pipeline_mode<synchronous>, transform_indices = @transform_3, window_bounds = array<i64: 2, 128>}, {transform_indices = @transform_4, window_bounds = array<i64: 8, 16, 128>}]} {
    %c0 = arith.constant 0 : index
    %c0_0 = arith.constant 0 : index
    %c0_1 = arith.constant 0 : index
    %0 = vector.load %arg1[%c0, %c0_0, %c0_1] : memref<8x16x128xbf16, #tpu.memory_space<vmem>>, vector<8x16x128xbf16>
    %c0_2 = arith.constant 0 : index
    %c0_3 = arith.constant 0 : index
    %1 = vector.load %arg4[%c0_2, %c0_3] : memref<2x128xf32, #tpu.memory_space<vmem>>, vector<2x128xf32>
    %2 = vector.extract_strided_slice %1 {offsets = [0, 0], sizes = [1, 128], strides = [1, 1]} : vector<2x128xf32> to vector<1x128xf32>
    %3 = vector.extract_strided_slice %1 {offsets = [1, 0], sizes = [1, 128], strides = [1, 1]} : vector<2x128xf32> to vector<1x128xf32>
    %cst = arith.constant 0.000000e+00 : bf16
    %4 = vector.broadcast %cst : bf16 to vector<8x1x128xbf16>
    %5 = vector.extract_strided_slice %0 {offsets = [0, 0, 0], sizes = [8, 15, 128], strides = [1, 1, 1]} : vector<8x16x128xbf16> to vector<8x15x128xbf16>
    %6 = tpu.concatenate %4, %5 in 1 : vector<8x1x128xbf16>, vector<8x15x128xbf16> -> vector<8x16x128xbf16>
    %7 = vector.extract_strided_slice %0 {offsets = [0, 1, 0], sizes = [8, 15, 128], strides = [1, 1, 1]} : vector<8x16x128xbf16> to vector<8x15x128xbf16>
    %8 = tpu.concatenate %7, %4 in 1 : vector<8x15x128xbf16>, vector<8x1x128xbf16> -> vector<8x16x128xbf16>
    %9 = tpu.concatenate %6, %0, %8 in 2 : vector<8x16x128xbf16>, vector<8x16x128xbf16>, vector<8x16x128xbf16> -> vector<8x16x384xbf16>
    %10 = vector.shape_cast %9 : vector<8x16x384xbf16> to vector<128x384xbf16>
    %c0_4 = arith.constant 0 : index
    %c0_5 = arith.constant 0 : index
    %11 = vector.load %arg2[%c0_4, %c0_5] : memref<384x128xbf16, #tpu.memory_space<vmem>>, vector<384x128xbf16>
    %cst_6 = arith.constant dense<0.000000e+00> : vector<128x128xf32>
    %12 = tpu.matmul %10, %11, %cst_6 {dimension_numbers = #tpu.dot_dimension_numbers<[1], [0], [0], [1], [0, 0, 1, 1], [], []>} : vector<128x384xbf16>, vector<384x128xbf16>, vector<128x128xf32> -> vector<128x128xf32>
    %13 = vector.broadcast %2 : vector<1x128xf32> to vector<128x128xf32>
    %14 = arith.addf %12, %13 : vector<128x128xf32>
    %cst_7 = arith.constant 0.000000e+00 : f32
    %15 = vector.broadcast %cst_7 : f32 to vector<128x128xf32>
    %16 = arith.cmpf oge, %14, %15 : vector<128x128xf32>
    %cst_8 = arith.constant 1.000000e-01 : f32
    %17 = vector.broadcast %cst_8 : f32 to vector<128x128xf32>
    %18 = arith.mulf %17, %14 : vector<128x128xf32>
    %19 = arith.select %16, %14, %18 : vector<128x128xi1>, vector<128x128xf32>
    %20 = vector.shape_cast %19 : vector<128x128xf32> to vector<8x16x128xf32>
    %21 = arith.truncf %20 : vector<8x16x128xf32> to vector<8x16x128xbf16>
    %cst_9 = arith.constant 0.000000e+00 : bf16
    %22 = vector.broadcast %cst_9 : bf16 to vector<8x1x128xbf16>
    %23 = vector.extract_strided_slice %21 {offsets = [0, 0, 0], sizes = [8, 15, 128], strides = [1, 1, 1]} : vector<8x16x128xbf16> to vector<8x15x128xbf16>
    %24 = tpu.concatenate %22, %23 in 1 : vector<8x1x128xbf16>, vector<8x15x128xbf16> -> vector<8x16x128xbf16>
    %25 = vector.extract_strided_slice %21 {offsets = [0, 1, 0], sizes = [8, 15, 128], strides = [1, 1, 1]} : vector<8x16x128xbf16> to vector<8x15x128xbf16>
    %26 = tpu.concatenate %25, %22 in 1 : vector<8x15x128xbf16>, vector<8x1x128xbf16> -> vector<8x16x128xbf16>
    %27 = tpu.concatenate %24, %21, %26 in 2 : vector<8x16x128xbf16>, vector<8x16x128xbf16>, vector<8x16x128xbf16> -> vector<8x16x384xbf16>
    %28 = vector.shape_cast %27 : vector<8x16x384xbf16> to vector<128x384xbf16>
    %c0_10 = arith.constant 0 : index
    %c0_11 = arith.constant 0 : index
    %29 = vector.load %arg3[%c0_10, %c0_11] : memref<384x128xbf16, #tpu.memory_space<vmem>>, vector<384x128xbf16>
    %cst_12 = arith.constant dense<0.000000e+00> : vector<128x128xf32>
    %30 = tpu.matmul %28, %29, %cst_12 {dimension_numbers = #tpu.dot_dimension_numbers<[1], [0], [0], [1], [0, 0, 1, 1], [], []>} : vector<128x384xbf16>, vector<384x128xbf16>, vector<128x128xf32> -> vector<128x128xf32>
    %31 = vector.broadcast %3 : vector<1x128xf32> to vector<128x128xf32>
    %32 = arith.addf %30, %31 : vector<128x128xf32>
    %33 = vector.shape_cast %0 : vector<8x16x128xbf16> to vector<128x128xbf16>
    %34 = arith.extf %33 : vector<128x128xbf16> to vector<128x128xf32>
    %35 = arith.addf %32, %34 : vector<128x128xf32>
    %cst_13 = arith.constant 0.000000e+00 : f32
    %36 = vector.broadcast %cst_13 : f32 to vector<128x128xf32>
    %37 = arith.cmpf oge, %35, %36 : vector<128x128xf32>
    %cst_14 = arith.constant 1.000000e-01 : f32
    %38 = vector.broadcast %cst_14 : f32 to vector<128x128xf32>
    %39 = arith.mulf %38, %35 : vector<128x128xf32>
    %40 = arith.select %37, %35, %39 : vector<128x128xi1>, vector<128x128xf32>
    %41 = vector.shape_cast %40 : vector<128x128xf32> to vector<8x16x128xf32>
    %42 = arith.truncf %41 : vector<8x16x128xf32> to vector<8x16x128xbf16>
    %c0_15 = arith.constant 0 : index
    %c0_16 = arith.constant 0 : index
    %c0_17 = arith.constant 0 : index
    %43 = vector.load %arg5[%c0_15, %c0_16, %c0_17] : memref<8x16x128xbf16, #tpu.memory_space<vmem>>, vector<8x16x128xbf16>
    tpu.vector_store %arg5[%c0_15, %c0_16, %c0_17], %42 {strides = array<i32>} : memref<8x16x128xbf16, #tpu.memory_space<vmem>>, vector<8x16x128xbf16>,
    return
  }
  func.func @transform_0(%arg0: i32) -> (i32, i32, i32) {
    %c0_i32 = arith.constant 0 : i32
    %c0_i32_0 = arith.constant 0 : i32
    %c0_i32_1 = arith.constant 0 : i32
    return %arg0, %c0_i32, %c0_i32_0 : i32, i32, i32
  }
  func.func @transform_1(%arg0: i32) -> (i32, i32) {
    %c0_i32 = arith.constant 0 : i32
    %c0_i32_0 = arith.constant 0 : i32
    %c0_i32_1 = arith.constant 0 : i32
    return %c0_i32, %c0_i32_0 : i32, i32
  }
  func.func @transform_2(%arg0: i32) -> (i32, i32) {
    %c0_i32 = arith.constant 0 : i32
    %c0_i32_0 = arith.constant 0 : i32
    %c0_i32_1 = arith.constant 0 : i32
    return %c0_i32, %c0_i32_0 : i32, i32
  }
  func.func @transform_3(%arg0: i32) -> (i32, i32) {
    %c0_i32 = arith.constant 0 : i32
    %c0_i32_0 = arith.constant 0 : i32
    %c0_i32_1 = arith.constant 0 : i32
    return %c0_i32, %c0_i32_0 : i32, i32
  }
  func.func @transform_4(%arg0: i32) -> (i32, i32, i32) {
    %c0_i32 = arith.constant 0 : i32
    %c0_i32_0 = arith.constant 0 : i32
    %c0_i32_1 = arith.constant 0 : i32
    return %arg0, %c0_i32, %c0_i32_0 : i32, i32, i32
  }
}

</mosaic_0001>

<llo_original>
// kernel: basic_block_forward.1
$region0: #{basic_block_forward.1}
  #allocation0 [shape = 'u32[]', space=smem, size = 0x4, offset = 0x4, fixed_abs, tag = 'smem constant byte address 0x4 - core index']
  #allocation1 [shape = 'u32[72,128]{1,0:T(1,128)}', space=vmem, size = 0x9000, scoped, tag = 'internal scratch']
  %s0 = inlined_call_operand.vmem [shape: bf16[16,16,128], index: 0, kind: input, shape index: {}]
  %s1 = inlined_call_operand.vmem [shape: bf16[384,128], index: 1, kind: input, shape index: {}]
  %s2 = inlined_call_operand.vmem [shape: bf16[384,128], index: 2, kind: input, shape index: {}]
  %s3 = inlined_call_operand.vmem [shape: f32[2,128], index: 3, kind: input, shape index: {}]
  %s4 = inlined_call_operand.vmem [shape: bf16[16,16,128], index: 4, kind: output, shape index: {}]
  %s5 = sld [smem:[#allocation0]]
  $region49: #{basic_block_forward.1} parent=0
    _
  %s7 = ssub.s32 1, %s5
  %s8 = scalar_select 0, %s7, %s5
  loop: start=0, step=1, limit=4
  $region2: #{basic_block_forward.1} parent=0 // loop_pre_header
    _
  $region3: #{basic_block_forward.1} parent=0 // loop_header
    %s10 = sphi 0, %s14
    %p11 = scmp.ge.s32.totalorder %s10, 4
    %s20 = sphi 0, %s22
    %s23 = sphi 0, %s20
    %s24 = sphi 0, %s23
    %s40 = sphi 0, %s24
    %s44 = sphi 0, %s44
    %s46 = sphi 0, %s44
    %s47 = sphi 0, %s46
    %s61 = sphi 0, %s47
    %s65 = sphi 0, %s65
    %s67 = sphi 0, %s65
    %s68 = sphi 0, %s67
    %s82 = sphi 0, %s68
    %s86 = sphi 0, %s86
    %s88 = sphi 0, %s86
    %s89 = sphi 0, %s88
    %s103 = sphi 0, %s89
    %s109 = sphi 0, %s111
    %s112 = sphi 0, %s109
    %s113 = sphi 0, %s112
    %s129 = sphi 0, %s113
  $region4: #{basic_block_forward.1} parent=0 // loop_header_branch
    %13 = sbr.rel (%p11) target = $region8
  $region5: #{basic_block_forward.1} parent=0 // loop_body
    %s15 = ssub.s32 %s10, 1
    %s16 = ssub.s32 %s10, 2
    %s17 = sadd.s32 %s10, 1
    %s18 = ssub.s32 %s10, %s17
    %p19 = scmp.eq.s32.totalorder %s18, 0
    %s21 = sadd.s32 %s20, 1
    %s22 = scalar_select %p19, %s20, %s21
    %p25 = pneg %p19
    %p26 = scmp.eq.s32.totalorder %s10, 1
    %p27 = por %p25, %p26
    %p28 = scmp.ne.s32.totalorder %s20, %s23
    %p29 = scmp.eq.s32.totalorder %s10, 0
    %p30 = por %p28, %p29
    %p31 = scmp.ne.s32.totalorder %s20, %s23
    %p32 = scmp.eq.s32.totalorder %s15, 1
    %p33 = por %p31, %p32
    %p34 = scmp.ne.s32.totalorder %s23, %s24
    %p35 = scmp.eq.s32.totalorder %s15, 0
    %p36 = por %p34, %p35
    %p37 = scmp.ne.s32.totalorder %s23, %s24
    %p38 = scmp.eq.s32.totalorder %s16, 1
    %p39 = por %p37, %p38
    %p41 = scmp.ne.s32.totalorder %s24, %s40
    %p42 = scmp.eq.s32.totalorder %s16, 0
    %p43 = por %p41, %p42
    %s45 = sadd.s32 %s44, 1
    %p48 = scmp.eq.s32.totalorder %s10, 1
    %p49 = scmp.ne.s32.totalorder %s44, %s46
    %p50 = scmp.eq.s32.totalorder %s10, 0
    %p51 = por %p49, %p50
    %p52 = scmp.ne.s32.totalorder %s44, %s46
    %p53 = scmp.eq.s32.totalorder %s15, 1
    %p54 = por %p52, %p53
    %p55 = scmp.ne.s32.totalorder %s46, %s47
    %p56 = scmp.eq.s32.totalorder %s15, 0
    %p57 = por %p55, %p56
    %p58 = scmp.ne.s32.totalorder %s46, %s47
    %p59 = scmp.eq.s32.totalorder %s16, 1
    %p60 = por %p58, %p59
    %p62 = scmp.ne.s32.totalorder %s47, %s61
    %p63 = scmp.eq.s32.totalorder %s16, 0
    %p64 = por %p62, %p63
    %s66 = sadd.s32 %s65, 1
    %p69 = scmp.eq.s32.totalorder %s10, 1
    %p70 = scmp.ne.s32.totalorder %s65, %s67
    %p71 = scmp.eq.s32.totalorder %s10, 0
    %p72 = por %p70, %p71
    %p73 = scmp.ne.s32.totalorder %s65, %s67
    %p74 = scmp.eq.s32.totalorder %s15, 1
    %p75 = por %p73, %p74
    %p76 = scmp.ne.s32.totalorder %s67, %s68
    %p77 = scmp.eq.s32.totalorder %s15, 0
    %p78 = por %p76, %p77
    %p79 = scmp.ne.s32.totalorder %s67, %s68
    %p80 = scmp.eq.s32.totalorder %s16, 1
    %p81 = por %p79, %p80
    %p83 = scmp.ne.s32.totalorder %s68, %s82
    %p84 = scmp.eq.s32.totalorder %s16, 0
    %p85 = por %p83, %p84
    %s87 = sadd.s32 %s86, 1
    %p90 = scmp.eq.s32.totalorder %s10, 1
    %p91 = scmp.ne.s32.totalorder %s86, %s88
    %p92 = scmp.eq.s32.totalorder %s10, 0
    %p93 = por %p91, %p92
    %p94 = scmp.ne.s32.totalorder %s86, %s88
    %p95 = scmp.eq.s32.totalorder %s15, 1
    %p96 = por %p94, %p95
    %p97 = scmp.ne.s32.totalorder %s88, %s89
    %p98 = scmp.eq.s32.totalorder %s15, 0
    %p99 = por %p97, %p98
    %p100 = scmp.ne.s32.totalorder %s88, %s89
    %p101 = scmp.eq.s32.totalorder %s16, 1
    %p102 = por %p100, %p101
    %p104 = scmp.ne.s32.totalorder %s89, %s103
    %p105 = scmp.eq.s32.totalorder %s16, 0
    %p106 = por %p104, %p105
    %s107 = ssub.s32 %s10, %s17
    %p108 = scmp.eq.s32.totalorder %s107, 0
    %s110 = sadd.s32 %s109, 1
    %s111 = scalar_select %p108, %s109, %s110
    %p114 = pneg %p108
    %p115 = scmp.eq.s32.totalorder %s10, 1
    %p116 = por %p114, %p115
    %p117 = scmp.ne.s32.totalorder %s109, %s112
    %p118 = scmp.eq.s32.totalorder %s10, 0
    %p119 = por %p117, %p118
    %p120 = scmp.ne.s32.totalorder %s109, %s112
    %p121 = scmp.eq.s32.totalorder %s15, 1
    %p122 = por %p120, %p121
    %p123 = scmp.ne.s32.totalorder %s112, %s113
    %p124 = scmp.eq.s32.totalorder %s15, 0
    %p125 = por %p123, %p124
    %p126 = scmp.ne.s32.totalorder %s112, %s113
    %p127 = scmp.eq.s32.totalorder %s16, 1
    %p128 = por %p126, %p127
    %p130 = scmp.ne.s32.totalorder %s113, %s129
    %p131 = scmp.eq.s32.totalorder %s16, 0
    %p132 = por %p130, %p131
    %p133 = scmp.le.s32.totalorder 1, %s10
    %p134 = scmp.lt.s32.totalorder %s10, 3
    %p135 = pnand %p133, %p134
    %p136 = pneg %p135
    // Predicated region
    $region9: #{basic_block_forward.1} parent=5 // pred_check
      _
    $region10: #{basic_block_forward.1} parent=5 // pred_check_branch
      %138 = sbr.rel (%p135) target = $region12
    $region11: #{basic_block_forward.1} parent=5 // pred_region
      %s139 = ssub.s32 %s10, 1
      // Predicated region
      $region13: #{basic_block_forward.1} parent=11 // pred_check
        %p140 = pneg %p57
      $region14: #{basic_block_forward.1} parent=11 // pred_check_branch
        %142 = sbr.rel (%p140) target = $region16
      $region15: #{basic_block_forward.1} parent=11 // pred_region
        _
      $region16: #{basic_block_forward.1} parent=11 // pred_fallthru
        _
      // Predicated region
      $region17: #{basic_block_forward.1} parent=11 // pred_check
        %p143 = pneg %p78
      $region18: #{basic_block_forward.1} parent=11 // pred_check_branch
        %145 = sbr.rel (%p143) target = $region20
      $region19: #{basic_block_forward.1} parent=11 // pred_region
        _
      $region20: #{basic_block_forward.1} parent=11 // pred_fallthru
        _
      // Predicated region
      $region21: #{basic_block_forward.1} parent=11 // pred_check
        %p146 = pneg %p99
      $region22: #{basic_block_forward.1} parent=11 // pred_check_branch
        %148 = sbr.rel (%p146) target = $region24
      $region23: #{basic_block_forward.1} parent=11 // pred_region
        _
      $region24: #{basic_block_forward.1} parent=11 // pred_fallthru
        _
    $region12: #{basic_block_forward.1} parent=5 // pred_fallthru
      _
    %p149 = scmp.lt.s32.totalorder %s10, 2
    // Predicated region
    $region25: #{basic_block_forward.1} parent=5 // pred_check
      %p150 = pneg %p149
    $region26: #{basic_block_forward.1} parent=5 // pred_check_branch
      %152 = sbr.rel (%p150) target = $region28
    $region27: #{basic_block_forward.1} parent=5 // pred_region
      // Predicated region
      $region29: #{basic_block_forward.1} parent=27 // pred_check
        %p153 = pneg %p30
      $region30: #{basic_block_forward.1} parent=27 // pred_check_branch
        %155 = sbr.rel (%p153) target = $region32
      $region31: #{basic_block_forward.1} parent=27 // pred_region
        %s156 = smul.u32 8, %s10
        %p157 = scmp.lt.s32.totalorder %s156, 15
        %s158 = scalar_select %p157, %s156, 15
        %s159 = smul.addr %s158, 2
        %s160 = smul.addr %s159, 4
        %s161 = scalar_lea.vmem %s0, %s160
        %s162 = smul.u32 8, %s10
      $region32: #{basic_block_forward.1} parent=27 // pred_fallthru
        _
    $region28: #{basic_block_forward.1} parent=5 // pred_fallthru
      _
    %p163 = scmp.le.s32.totalorder 1, %s10
    %p164 = scmp.lt.s32.totalorder %s10, 3
    %p165 = pnand %p163, %p164
    %p166 = pneg %p165
    // Predicated region
    $region33: #{basic_block_forward.1} parent=5 // pred_check
      _
    $region34: #{basic_block_forward.1} parent=5 // pred_check_branch
      %168 = sbr.rel (%p165) target = $region36
    $region35: #{basic_block_forward.1} parent=5 // pred_region
      %s169 = ssub.s32 %s10, 1
      %s170 = smul.u32 8, %s15
      %p171 = scmp.lt.s32.totalorder %s170, 15
      %s172 = scalar_select %p171, %s170, 15
      %s173 = smul.addr %s172, 2
      %s174 = smul.addr %s173, 4
      %s175 = scalar_lea.vmem %s0, %s174
      %p176 = pneg %p36
      %p177 = pneg %p33
      %p178 = pneg %p57
      %p179 = pneg %p54
      %p180 = pneg %p78
      %p181 = pneg %p75
      %p182 = pneg %p99
      %p183 = pneg %p96
      %p184 = pneg %p125
      %p185 = pneg %p122
      %s186 = smul.u32 8, %s15
      %p187 = scmp.lt.s32.totalorder %s186, 15
      %s188 = scalar_select %p187, %s186, 15
      %s189 = smul.addr %s188, 2
      %s190 = smul.addr %s189, 4
      %s191 = scalar_lea.vmem %s4, %s190
      %s192 = smul.u32 8, %s15
      %p193 = scmp.lt.s32.totalorder %s192, 15
      %s194 = scalar_select %p193, %s192, 15
      %s195 = smul.addr %s194, 2
      %s196 = smul.addr %s195, 4
      %s197 = scalar_lea.vmem %s0, %s196
      %s198 = smul.u32 8, %s15
      %s199 = smul.u32 8, %s15
      %p200 = scmp.lt.s32.totalorder %s199, 15
      %s201 = scalar_select %p200, %s199, 15
      %s202 = smul.addr %s201, 2
      %s203 = smul.addr %s202, 4
      %s204 = scalar_lea.vmem %s4, %s203
      %s205 = smul.u32 8, %s15
      %v207 = vld [vmem:[%s197] sm:$0xf]
      %v208 = vld [vmem:[%s197 + $0x4] sm:$0xf]
      %v209 = vld [vmem:[%s197 + $0x8] sm:$0xf]
      %v210 = vld [vmem:[%s197 + $0xc] sm:$0xf]
      %v211 = vld [vmem:[%s197 + $0x10] sm:$0xf]
      %v212 = vld [vmem:[%s197 + $0x14] sm:$0xf]
      %v213 = vld [vmem:[%s197 + $0x18] sm:$0xf]
      %v214 = vld [vmem:[%s197 + $0x1c] sm:$0xf]
      %v215 = vld [vmem:[%s197 + $0x20] sm:$0xf]
      %v216 = vld [vmem:[%s197 + $0x24] sm:$0xf]
      %v217 = vld [vmem:[%s197 + $0x28] sm:$0xf]
      %v218 = vld [vmem:[%s197 + $0x2c] sm:$0xf]
      %v219 = vld [vmem:[%s197 + $0x30] sm:$0xf]
      %v220 = vld [vmem:[%s197 + $0x34] sm:$0xf]
      %v221 = vld [vmem:[%s197 + $0x38] sm:$0xf]
      %v222 = vld [vmem:[%s197 + $0x3c] sm:$0xf]
      %v223 = vld [vmem:[%s3] sm:$0x3]
      %v240 = vunpack.c.l.b16 %v207
      %v241 = vunpack.c.l.b16 %v208
      %v242 = vunpack.c.l.b16 %v209
      %v243 = vunpack.c.l.b16 %v210
      %v244 = vunpack.c.l.b16 %v211
      %v245 = vunpack.c.l.b16 %v212
      %v246 = vunpack.c.l.b16 %v213
      %v247 = vunpack.c.l.b16 %v214
      %v248 = vunpack.c.l.b16 %v215
      %v249 = vunpack.c.l.b16 %v216
      %v250 = vunpack.c.l.b16 %v217
      %v251 = vunpack.c.l.b16 %v218
      %v252 = vunpack.c.l.b16 %v219
      %v253 = vunpack.c.l.b16 %v220
      %v254 = vunpack.c.l.b16 %v221
      %v255 = vunpack.c.l.b16 %v222
      %v256 = vpack.c.b16 %v241, %v240
      %v257 = vpack.c.b16 %v243, %v242
      %v258 = vpack.c.b16 %v245, %v244
      %v259 = vpack.c.b16 %v247, %v246
      %v260 = vpack.c.b16 %v249, %v248
      %v261 = vpack.c.b16 %v251, %v250
      %v262 = vpack.c.b16 %v253, %v252
      %v263 = vpack.c.b16 %v255, %v254
      %v265 = vshrl.u32 %v256, 16
      %v267 = vrot.slane %v265, 7
      %v268 = vshll.u32 %v256, 16
      %v270 = vor.u32 %v267, %v268
      %v272 = vshrl.u32 %v257, 16
      %v274 = vrot.slane %v272, 7
      %v275 = vshll.u32 %v257, 16
      %v277 = vor.u32 %v274, %v275
      %v279 = vshrl.u32 %v258, 16
      %v281 = vrot.slane %v279, 7
      %v282 = vshll.u32 %v258, 16
      %v284 = vor.u32 %v281, %v282
      %v286 = vshrl.u32 %v259, 16
      %v288 = vrot.slane %v286, 7
      %v289 = vshll.u32 %v259, 16
      %v291 = vor.u32 %v288, %v289
      %v293 = vshrl.u32 %v260, 16
      %v295 = vrot.slane %v293, 7
      %v296 = vshll.u32 %v260, 16
      %v298 = vor.u32 %v295, %v296
      %v300 = vshrl.u32 %v261, 16
      %v302 = vrot.slane %v300, 7
      %v303 = vshll.u32 %v261, 16
      %v305 = vor.u32 %v302, %v303
      %v307 = vshrl.u32 %v262, 16
      %v309 = vrot.slane %v307, 7
      %v310 = vshll.u32 %v262, 16
      %v312 = vor.u32 %v309, %v310
      %v314 = vshrl.u32 %v263, 16
      %v316 = vrot.slane %v314, 7
      %v317 = vshll.u32 %v263, 16
      %v319 = vor.u32 %v316, %v317
      %vm328 = vcmask 1040384
      %vm329 = vsmask.f32 256
      %vm330 = vmand %vm328, %vm329
      %v331 = vsel %vm330, 0, %v270
      %v332 = vsel %vm330, 0, %v277
      %v333 = vsel %vm330, 0, %v284
      %v334 = vsel %vm330, 0, %v291
      %v335 = vsel %vm330, 0, %v298
      %v336 = vsel %vm330, 0, %v305
      %v337 = vsel %vm330, 0, %v312
      %v338 = vsel %vm330, 0, %v319
      %v339 = vrot.slane %v268, 1
      %v340 = vor.u32 %v265, %v339
      %v341 = vrot.slane %v275, 1
      %v342 = vor.u32 %v272, %v341
      %v343 = vrot.slane %v282, 1
      %v344 = vor.u32 %v279, %v343
      %v345 = vrot.slane %v289, 1
      %v346 = vor.u32 %v286, %v345
      %v347 = vrot.slane %v296, 1
      %v348 = vor.u32 %v293, %v347
      %v349 = vrot.slane %v303, 1
      %v350 = vor.u32 %v300, %v349
      %v351 = vrot.slane %v310, 1
      %v352 = vor.u32 %v307, %v351
      %v353 = vrot.slane %v317, 1
      %v354 = vor.u32 %v314, %v353
      %vm363 = vcmask 1047552
      %vm364 = vsmask.f32 7424
      %vm365 = vmand %vm363, %vm364
      %v366 = vsel %vm365, %v340, 0
      %v367 = vsel %vm365, %v342, 0
      %v368 = vsel %vm365, %v344, 0
      %v369 = vsel %vm365, %v346, 0
      %v370 = vsel %vm365, %v348, 0
      %v371 = vsel %vm365, %v350, 0
      %v372 = vsel %vm365, %v352, 0
      %v373 = vsel %vm365, %v354, 0
      %v382 = vld [vmem:[%s1] sm:$0xf]
      %v383 = vld [vmem:[%s1 + $0x4] sm:$0xf]
      %v384 = vld [vmem:[%s1 + $0x8] sm:$0xf]
      %v385 = vld [vmem:[%s1 + $0xc] sm:$0xf]
      %v386 = vld [vmem:[%s1 + $0x10] sm:$0xf]
      %v387 = vld [vmem:[%s1 + $0x14] sm:$0xf]
      %v388 = vld [vmem:[%s1 + $0x18] sm:$0xf]
      %v389 = vld [vmem:[%s1 + $0x1c] sm:$0xf]
      %v390 = vld [vmem:[%s1 + $0x20] sm:$0xf]
      %v391 = vld [vmem:[%s1 + $0x24] sm:$0xf]
      %v392 = vld [vmem:[%s1 + $0x28] sm:$0xf]
      %v393 = vld [vmem:[%s1 + $0x2c] sm:$0xf]
      %v394 = vld [vmem:[%s1 + $0x30] sm:$0xf]
      %v395 = vld [vmem:[%s1 + $0x34] sm:$0xf]
      %v396 = vld [vmem:[%s1 + $0x38] sm:$0xf]
      %v397 = vld [vmem:[%s1 + $0x3c] sm:$0xf]
      %v398 = vld [vmem:[%s1 + $0x40] sm:$0xf]
      %v399 = vld [vmem:[%s1 + $0x44] sm:$0xf]
      %v400 = vld [vmem:[%s1 + $0x48] sm:$0xf]
      %v401 = vld [vmem:[%s1 + $0x4c] sm:$0xf]
      %v402 = vld [vmem:[%s1 + $0x50] sm:$0xf]
      %v403 = vld [vmem:[%s1 + $0x54] sm:$0xf]
      %v404 = vld [vmem:[%s1 + $0x58] sm:$0xf]
      %v405 = vld [vmem:[%s1 + $0x5c] sm:$0xf]
      %v406 = vld [vmem:[%s1 + $0x60] sm:$0xf]
      %v407 = vld [vmem:[%s1 + $0x64] sm:$0xf]
      %v408 = vld [vmem:[%s1 + $0x68] sm:$0xf]
      %v409 = vld [vmem:[%s1 + $0x6c] sm:$0xf]
      %v410 = vld [vmem:[%s1 + $0x70] sm:$0xf]
      %v411 = vld [vmem:[%s1 + $0x74] sm:$0xf]
      %v412 = vld [vmem:[%s1 + $0x78] sm:$0xf]
      %v413 = vld [vmem:[%s1 + $0x7c] sm:$0xf]
      %v414 = vld [vmem:[%s1 + $0x80] sm:$0xf]
      %v415 = vld [vmem:[%s1 + $0x84] sm:$0xf]
      %v416 = vld [vmem:[%s1 + $0x88] sm:$0xf]
      %v417 = vld [vmem:[%s1 + $0x8c] sm:$0xf]
      %v418 = vld [vmem:[%s1 + $0x90] sm:$0xf]
      %v419 = vld [vmem:[%s1 + $0x94] sm:$0xf]
      %v420 = vld [vmem:[%s1 + $0x98] sm:$0xf]
      %v421 = vld [vmem:[%s1 + $0x9c] sm:$0xf]
      %v422 = vld [vmem:[%s1 + $0xa0] sm:$0xf]
      %v423 = vld [vmem:[%s1 + $0xa4] sm:$0xf]
      %v424 = vld [vmem:[%s1 + $0xa8] sm:$0xf]
      %v425 = vld [vmem:[%s1 + $0xac] sm:$0xf]
      %v426 = vld [vmem:[%s1 + $0xb0] sm:$0xf]
      %v427 = vld [vmem:[%s1 + $0xb4] sm:$0xf]
      %v428 = vld [vmem:[%s1 + $0xb8] sm:$0xf]
      %v429 = vld [vmem:[%s1 + $0xbc] sm:$0xf]
      %v430 = vperm.slane %v223, 0
      %v479 = vunpack.c.l.b16 %v382
      %v480 = vunpack.c.l.b16 %v383
      %v481 = vunpack.c.l.b16 %v384
      %v482 = vunpack.c.l.b16 %v385
      %v483 = vunpack.c.l.b16 %v386
      %v484 = vunpack.c.l.b16 %v387
      %v485 = vunpack.c.l.b16 %v388
      %v486 = vunpack.c.l.b16 %v389
      %v487 = vunpack.c.l.b16 %v390
      %v488 = vunpack.c.l.b16 %v391
      %v489 = vunpack.c.l.b16 %v392
      %v490 = vunpack.c.l.b16 %v393
      %v491 = vunpack.c.l.b16 %v394
      %v492 = vunpack.c.l.b16 %v395
      %v493 = vunpack.c.l.b16 %v396
      %v494 = vunpack.c.l.b16 %v397
      %v495 = vunpack.c.l.b16 %v398
      %v496 = vunpack.c.l.b16 %v399
      %v497 = vunpack.c.l.b16 %v400
      %v498 = vunpack.c.l.b16 %v401
      %v499 = vunpack.c.l.b16 %v402
      %v500 = vunpack.c.l.b16 %v403
      %v501 = vunpack.c.l.b16 %v404
      %v502 = vunpack.c.l.b16 %v405
      %v503 = vunpack.c.l.b16 %v406
      %v504 = vunpack.c.l.b16 %v407
      %v505 = vunpack.c.l.b16 %v408
      %v506 = vunpack.c.l.b16 %v409
      %v507 = vunpack.c.l.b16 %v410
      %v508 = vunpack.c.l.b16 %v411
      %v509 = vunpack.c.l.b16 %v412
      %v510 = vunpack.c.l.b16 %v413
      %v511 = vunpack.c.l.b16 %v414
      %v512 = vunpack.c.l.b16 %v415
      %v513 = vunpack.c.l.b16 %v416
      %v514 = vunpack.c.l.b16 %v417
      %v515 = vunpack.c.l.b16 %v418
      %v516 = vunpack.c.l.b16 %v419
      %v517 = vunpack.c.l.b16 %v420
      %v518 = vunpack.c.l.b16 %v421
      %v519 = vunpack.c.l.b16 %v422
      %v520 = vunpack.c.l.b16 %v423
      %v521 = vunpack.c.l.b16 %v424
      %v522 = vunpack.c.l.b16 %v425
      %v523 = vunpack.c.l.b16 %v426
      %v524 = vunpack.c.l.b16 %v427
      %v525 = vunpack.c.l.b16 %v428
      %v526 = vunpack.c.l.b16 %v429
      %v527 = vpack.c.b16 %v480, %v479
      %v528 = vpack.c.b16 %v482, %v481
      %v529 = vpack.c.b16 %v484, %v483
      %v530 = vpack.c.b16 %v486, %v485
      %v531 = vpack.c.b16 %v488, %v487
      %v532 = vpack.c.b16 %v490, %v489
      %v533 = vpack.c.b16 %v492, %v491
      %v534 = vpack.c.b16 %v494, %v493
      %v535 = vpack.c.b16 %v496, %v495
      %v536 = vpack.c.b16 %v498, %v497
      %v537 = vpack.c.b16 %v500, %v499
      %v538 = vpack.c.b16 %v502, %v501
      %v539 = vpack.c.b16 %v504, %v503
      %v540 = vpack.c.b16 %v506, %v505
      %v541 = vpack.c.b16 %v508, %v507
      %v542 = vpack.c.b16 %v510, %v509
      %v543 = vpack.c.b16 %v512, %v511
      %v544 = vpack.c.b16 %v514, %v513
      %v545 = vpack.c.b16 %v516, %v515
      %v546 = vpack.c.b16 %v518, %v517
      %v547 = vpack.c.b16 %v520, %v519
      %v548 = vpack.c.b16 %v522, %v521
      %v549 = vpack.c.b16 %v524, %v523
      %v550 = vpack.c.b16 %v526, %v525
      %575 = vmatpush.bf16.msra.mxu0 %v534
      %576 = vmatpush.bf16.msra.mxu0 %v533
      %577 = vmatpush.bf16.msra.mxu0 %v532
      %578 = vmatpush.bf16.msra.mxu0 %v531
      %579 = vmatpush.bf16.msra.mxu0 %v530
      %580 = vmatpush.bf16.msra.mxu0 %v529
      %581 = vmatpush.bf16.msra.mxu0 %v528
      %582 = vmatpush.bf16.msra.mxu0 %v527
      %583 = vmatmul.bf16.gmra.mxu0 %v331
      %v584 = vpop.f32.mrf.mxu0
      %v585 = vadd.f32 %v430, %v584
      %v586 = vpop.f32.mrf.mxu0
      %v587 = vadd.f32 %v430, %v586
      %588 = vmatmul.bf16.gmra.mxu0 %v332
      %v589 = vpop.f32.mrf.mxu0
      %v590 = vadd.f32 %v430, %v589
      %v591 = vpop.f32.mrf.mxu0
      %v592 = vadd.f32 %v430, %v591
      %593 = vmatmul.bf16.gmra.mxu0 %v333
      %v594 = vpop.f32.mrf.mxu0
      %v595 = vadd.f32 %v430, %v594
      %v596 = vpop.f32.mrf.mxu0
      %v597 = vadd.f32 %v430, %v596
      %598 = vmatmul.bf16.gmra.mxu0 %v334
      %v599 = vpop.f32.mrf.mxu0
      %v600 = vadd.f32 %v430, %v599
      %v601 = vpop.f32.mrf.mxu0
      %v602 = vadd.f32 %v430, %v601
      %603 = vmatmul.bf16.gmra.mxu0 %v335
      %v604 = vpop.f32.mrf.mxu0
      %v605 = vadd.f32 %v430, %v604
      %v606 = vpop.f32.mrf.mxu0
      %v607 = vadd.f32 %v430, %v606
      %608 = vmatmul.bf16.gmra.mxu0 %v336
      %v609 = vpop.f32.mrf.mxu0
      %v610 = vadd.f32 %v430, %v609
      %v611 = vpop.f32.mrf.mxu0
      %v612 = vadd.f32 %v430, %v611
      %613 = vmatmul.bf16.gmra.mxu0 %v337
      %v614 = vpop.f32.mrf.mxu0
      %v615 = vadd.f32 %v430, %v614
      %v616 = vpop.f32.mrf.mxu0
      %v617 = vadd.f32 %v430, %v616
      %618 = vmatmul.bf16.gmra.mxu0 %v338
      %v619 = vpop.f32.mrf.mxu0
      %v620 = vadd.f32 %v430, %v619
      %v621 = vpop.f32.mrf.mxu0
      %v622 = vadd.f32 %v430, %v621
      %623 = vdwg.mxu0
      %624 = vmatpush.bf16.msra.mxu0 %v542
      %625 = vmatpush.bf16.msra.mxu0 %v541
      %626 = vmatpush.bf16.msra.mxu0 %v540
      %627 = vmatpush.bf16.msra.mxu0 %v539
      %628 = vmatpush.bf16.msra.mxu0 %v538
      %629 = vmatpush.bf16.msra.mxu0 %v537
      %630 = vmatpush.bf16.msra.mxu0 %v536
      %631 = vmatpush.bf16.msra.mxu0 %v535
      %632 = vmatmul.bf16.gmra.mxu0 %v256
      %v633 = vpop.f32.mrf.mxu0
      %v634 = vadd.f32 %v585, %v633
      %v635 = vpop.f32.mrf.mxu0
      %v636 = vadd.f32 %v587, %v635
      %637 = vmatmul.bf16.gmra.mxu0 %v257
      %v638 = vpop.f32.mrf.mxu0
      %v639 = vadd.f32 %v590, %v638
      %v640 = vpop.f32.mrf.mxu0
      %v641 = vadd.f32 %v592, %v640
      %642 = vmatmul.bf16.gmra.mxu0 %v258
      %v643 = vpop.f32.mrf.mxu0
      %v644 = vadd.f32 %v595, %v643
      %v645 = vpop.f32.mrf.mxu0
      %v646 = vadd.f32 %v597, %v645
      %647 = vmatmul.bf16.gmra.mxu0 %v259
      %v648 = vpop.f32.mrf.mxu0
      %v649 = vadd.f32 %v600, %v648
      %v650 = vpop.f32.mrf.mxu0
      %v651 = vadd.f32 %v602, %v650
      %652 = vmatmul.bf16.gmra.mxu0 %v260
      %v653 = vpop.f32.mrf.mxu0
      %v654 = vadd.f32 %v605, %v653
      %v655 = vpop.f32.mrf.mxu0
      %v656 = vadd.f32 %v607, %v655
      %657 = vmatmul.bf16.gmra.mxu0 %v261
      %v658 = vpop.f32.mrf.mxu0
      %v659 = vadd.f32 %v610, %v658
      %v660 = vpop.f32.mrf.mxu0
      %v661 = vadd.f32 %v612, %v660
      %662 = vmatmul.bf16.gmra.mxu0 %v262
      %v663 = vpop.f32.mrf.mxu0
      %v664 = vadd.f32 %v615, %v663
      %v665 = vpop.f32.mrf.mxu0
      %v666 = vadd.f32 %v617, %v665
      %667 = vmatmul.bf16.gmra.mxu0 %v263
      %v668 = vpop.f32.mrf.mxu0
      %v669 = vadd.f32 %v620, %v668
      %v670 = vpop.f32.mrf.mxu0
      %v671 = vadd.f32 %v622, %v670
      %672 = vdwg.mxu0
      %673 = vmatpush.bf16.msra.mxu0 %v550
      %674 = vmatpush.bf16.msra.mxu0 %v549
      %675 = vmatpush.bf16.msra.mxu0 %v548
      %676 = vmatpush.bf16.msra.mxu0 %v547
      %677 = vmatpush.bf16.msra.mxu0 %v546
      %678 = vmatpush.bf16.msra.mxu0 %v545
      %679 = vmatpush.bf16.msra.mxu0 %v544
      %680 = vmatpush.bf16.msra.mxu0 %v543
      %681 = vmatmul.bf16.gmra.mxu0 %v366
      %v682 = vpop.f32.mrf.mxu0
      %v683 = vadd.f32 %v634, %v682
      %v684 = vpop.f32.mrf.mxu0
      %v685 = vadd.f32 %v636, %v684
      %686 = vmatmul.bf16.gmra.mxu0 %v367
      %v687 = vpop.f32.mrf.mxu0
      %v688 = vadd.f32 %v639, %v687
      %v689 = vpop.f32.mrf.mxu0
      %v690 = vadd.f32 %v641, %v689
      %691 = vmatmul.bf16.gmra.mxu0 %v368
      %v692 = vpop.f32.mrf.mxu0
      %v693 = vadd.f32 %v644, %v692
      %v694 = vpop.f32.mrf.mxu0
      %v695 = vadd.f32 %v646, %v694
      %696 = vmatmul.bf16.gmra.mxu0 %v369
      %v697 = vpop.f32.mrf.mxu0
      %v698 = vadd.f32 %v649, %v697
      %v699 = vpop.f32.mrf.mxu0
      %v700 = vadd.f32 %v651, %v699
      %701 = vmatmul.bf16.gmra.mxu0 %v370
      %v702 = vpop.f32.mrf.mxu0
      %v703 = vadd.f32 %v654, %v702
      %v704 = vpop.f32.mrf.mxu0
      %v705 = vadd.f32 %v656, %v704
      %706 = vmatmul.bf16.gmra.mxu0 %v371
      %v707 = vpop.f32.mrf.mxu0
      %v708 = vadd.f32 %v659, %v707
      %v709 = vpop.f32.mrf.mxu0
      %v710 = vadd.f32 %v661, %v709
      %711 = vmatmul.bf16.gmra.mxu0 %v372
      %v712 = vpop.f32.mrf.mxu0
      %v713 = vadd.f32 %v664, %v712
      %v714 = vpop.f32.mrf.mxu0
      %v715 = vadd.f32 %v666, %v714
      %716 = vmatmul.bf16.gmra.mxu0 %v373
      %v717 = vpop.f32.mrf.mxu0
      %v718 = vadd.f32 %v669, %v717
      %v719 = vpop.f32.mrf.mxu0
      %v720 = vadd.f32 %v671, %v719
      %721 = vdwg.mxu0
      %vm722 = vcmp.ge.f32.partialorder %v683, 0.0
      %vm723 = vcmp.ge.f32.partialorder %v685, 0.0
      %vm724 = vcmp.ge.f32.partialorder %v688, 0.0
      %vm725 = vcmp.ge.f32.partialorder %v690, 0.0
      %vm726 = vcmp.ge.f32.partialorder %v693, 0.0
      %vm727 = vcmp.ge.f32.partialorder %v695, 0.0
      %vm728 = vcmp.ge.f32.partialorder %v698, 0.0
      %vm729 = vcmp.ge.f32.partialorder %v700, 0.0
      %vm730 = vcmp.ge.f32.partialorder %v703, 0.0
      %vm731 = vcmp.ge.f32.partialorder %v705, 0.0
      %vm732 = vcmp.ge.f32.partialorder %v708, 0.0
      %vm733 = vcmp.ge.f32.partialorder %v710, 0.0
      %vm734 = vcmp.ge.f32.partialorder %v713, 0.0
      %vm735 = vcmp.ge.f32.partialorder %v715, 0.0
      %vm736 = vcmp.ge.f32.partialorder %v718, 0.0
      %vm737 = vcmp.ge.f32.partialorder %v720, 0.0
      %v738 = vmul.f32 %v683, 0.1
      %v739 = vmul.f32 %v685, 0.1
      %v740 = vmul.f32 %v688, 0.1
      %v741 = vmul.f32 %v690, 0.1
      %v742 = vmul.f32 %v693, 0.1
      %v743 = vmul.f32 %v695, 0.1
      %v744 = vmul.f32 %v698, 0.1
      %v745 = vmul.f32 %v700, 0.1
      %v746 = vmul.f32 %v703, 0.1
      %v747 = vmul.f32 %v705, 0.1
      %v748 = vmul.f32 %v708, 0.1
      %v749 = vmul.f32 %v710, 0.1
      %v750 = vmul.f32 %v713, 0.1
      %v751 = vmul.f32 %v715, 0.1
      %v752 = vmul.f32 %v718, 0.1
      %v753 = vmul.f32 %v720, 0.1
      %v754 = vsel %vm722, %v683, %v738
      %v755 = vsel %vm723, %v685, %v739
      %v756 = vsel %vm724, %v688, %v740
      %v757 = vsel %vm725, %v690, %v741
      %v758 = vsel %vm726, %v693, %v742
      %v759 = vsel %vm727, %v695, %v743
      %v760 = vsel %vm728, %v698, %v744
      %v761 = vsel %vm729, %v700, %v745
      %v762 = vsel %vm730, %v703, %v746
      %v763 = vsel %vm731, %v705, %v747
      %v764 = vsel %vm732, %v708, %v748
      %v765 = vsel %vm733, %v710, %v749
      %v766 = vsel %vm734, %v713, %v750
      %v767 = vsel %vm735, %v715, %v751
      %v768 = vsel %vm736, %v718, %v752
      %v769 = vsel %vm737, %v720, %v753
      %v770 = vpack.c.bf16 %v754, %v754
      %v771 = vpack.c.bf16 %v755, %v755
      %v772 = vpack.c.bf16 %v756, %v756
      %v773 = vpack.c.bf16 %v757, %v757
      %v774 = vpack.c.bf16 %v758, %v758
      %v775 = vpack.c.bf16 %v759, %v759
      %v776 = vpack.c.bf16 %v760, %v760
      %v777 = vpack.c.bf16 %v761, %v761
      %v778 = vpack.c.bf16 %v762, %v762
      %v779 = vpack.c.bf16 %v763, %v763
      %v780 = vpack.c.bf16 %v764, %v764
      %v781 = vpack.c.bf16 %v765, %v765
      %v782 = vpack.c.bf16 %v766, %v766
      %v783 = vpack.c.bf16 %v767, %v767
      %v784 = vpack.c.bf16 %v768, %v768
      %v785 = vpack.c.bf16 %v769, %v769
      %v802 = vunpack.c.l.b16 %v770
      %v803 = vunpack.c.l.b16 %v771
      %v804 = vunpack.c.l.b16 %v772
      %v805 = vunpack.c.l.b16 %v773
      %v806 = vunpack.c.l.b16 %v774
      %v807 = vunpack.c.l.b16 %v775
      %v808 = vunpack.c.l.b16 %v776
      %v809 = vunpack.c.l.b16 %v777
      %v810 = vunpack.c.l.b16 %v778
      %v811 = vunpack.c.l.b16 %v779
      %v812 = vunpack.c.l.b16 %v780
      %v813 = vunpack.c.l.b16 %v781
      %v814 = vunpack.c.l.b16 %v782
      %v815 = vunpack.c.l.b16 %v783
      %v816 = vunpack.c.l.b16 %v784
      %v817 = vunpack.c.l.b16 %v785
      %v818 = vpack.c.b16 %v803, %v802
      %v819 = vpack.c.b16 %v805, %v804
      %v820 = vpack.c.b16 %v807, %v806
      %v821 = vpack.c.b16 %v809, %v808
      %v822 = vpack.c.b16 %v811, %v810
      %v823 = vpack.c.b16 %v813, %v812
      %v824 = vpack.c.b16 %v815, %v814
      %v825 = vpack.c.b16 %v817, %v816
      %v827 = vshrl.u32 %v818, 16
      %v829 = vrot.slane %v827, 7
      %v830 = vshll.u32 %v818, 16
      %v832 = vor.u32 %v829, %v830
      %v834 = vshrl.u32 %v819, 16
      %v836 = vrot.slane %v834, 7
      %v837 = vshll.u32 %v819, 16
      %v839 = vor.u32 %v836, %v837
      %v841 = vshrl.u32 %v820, 16
      %v843 = vrot.slane %v841, 7
      %v844 = vshll.u32 %v820, 16
      %v846 = vor.u32 %v843, %v844
      %v848 = vshrl.u32 %v821, 16
      %v850 = vrot.slane %v848, 7
      %v851 = vshll.u32 %v821, 16
      %v853 = vor.u32 %v850, %v851
      %v855 = vshrl.u32 %v822, 16
      %v857 = vrot.slane %v855, 7
      %v858 = vshll.u32 %v822, 16
      %v860 = vor.u32 %v857, %v858
      %v862 = vshrl.u32 %v823, 16
      %v864 = vrot.slane %v862, 7
      %v865 = vshll.u32 %v823, 16
      %v867 = vor.u32 %v864, %v865
      %v869 = vshrl.u32 %v824, 16
      %v871 = vrot.slane %v869, 7
      %v872 = vshll.u32 %v824, 16
      %v874 = vor.u32 %v871, %v872
      %v876 = vshrl.u32 %v825, 16
      %v878 = vrot.slane %v876, 7
      %v879 = vshll.u32 %v825, 16
      %v881 = vor.u32 %v878, %v879
      %v890 = vsel %vm330, 0, %v832
      %v891 = vsel %vm330, 0, %v839
      %v892 = vsel %vm330, 0, %v846
      %v893 = vsel %vm330, 0, %v853
      %v894 = vsel %vm330, 0, %v860
      %v895 = vsel %vm330, 0, %v867
      %v896 = vsel %vm330, 0, %v874
      %v897 = vsel %vm330, 0, %v881
      %v898 = vrot.slane %v830, 1
      %v899 = vor.u32 %v827, %v898
      %v900 = vrot.slane %v837, 1
      %v901 = vor.u32 %v834, %v900
      %v902 = vrot.slane %v844, 1
      %v903 = vor.u32 %v841, %v902
      %v904 = vrot.slane %v851, 1
      %v905 = vor.u32 %v848, %v904
      %v906 = vrot.slane %v858, 1
      %v907 = vor.u32 %v855, %v906
      %v908 = vrot.slane %v865, 1
      %v909 = vor.u32 %v862, %v908
      %v910 = vrot.slane %v872, 1
      %v911 = vor.u32 %v869, %v910
      %v912 = vrot.slane %v879, 1
      %v913 = vor.u32 %v876, %v912
      %v922 = vsel %vm365, %v899, 0
      %v923 = vsel %vm365, %v901, 0
      %v924 = vsel %vm365, %v903, 0
      %v925 = vsel %vm365, %v905, 0
      %v926 = vsel %vm365, %v907, 0
      %v927 = vsel %vm365, %v909, 0
      %v928 = vsel %vm365, %v911, 0
      %v929 = vsel %vm365, %v913, 0
      %v938 = vld [vmem:[%s2] sm:$0xf]
      %v939 = vld [vmem:[%s2 + $0x4] sm:$0xf]
      %v940 = vld [vmem:[%s2 + $0x8] sm:$0xf]
      %v941 = vld [vmem:[%s2 + $0xc] sm:$0xf]
      %v942 = vld [vmem:[%s2 + $0x10] sm:$0xf]
      %v943 = vld [vmem:[%s2 + $0x14] sm:$0xf]
      %v944 = vld [vmem:[%s2 + $0x18] sm:$0xf]
      %v945 = vld [vmem:[%s2 + $0x1c] sm:$0xf]
      %v946 = vld [vmem:[%s2 + $0x20] sm:$0xf]
      %v947 = vld [vmem:[%s2 + $0x24] sm:$0xf]
      %v948 = vld [vmem:[%s2 + $0x28] sm:$0xf]
      %v949 = vld [vmem:[%s2 + $0x2c] sm:$0xf]
      %v950 = vld [vmem:[%s2 + $0x30] sm:$0xf]
      %v951 = vld [vmem:[%s2 + $0x34] sm:$0xf]
      %v952 = vld [vmem:[%s2 + $0x38] sm:$0xf]
      %v953 = vld [vmem:[%s2 + $0x3c] sm:$0xf]
      %v954 = vld [vmem:[%s2 + $0x40] sm:$0xf]
      %v955 = vld [vmem:[%s2 + $0x44] sm:$0xf]
      %v956 = vld [vmem:[%s2 + $0x48] sm:$0xf]
      %v957 = vld [vmem:[%s2 + $0x4c] sm:$0xf]
      %v958 = vld [vmem:[%s2 + $0x50] sm:$0xf]
      %v959 = vld [vmem:[%s2 + $0x54] sm:$0xf]
      %v960 = vld [vmem:[%s2 + $0x58] sm:$0xf]
      %v961 = vld [vmem:[%s2 + $0x5c] sm:$0xf]
      %v962 = vld [vmem:[%s2 + $0x60] sm:$0xf]
      %v963 = vld [vmem:[%s2 + $0x64] sm:$0xf]
      %v964 = vld [vmem:[%s2 + $0x68] sm:$0xf]
      %v965 = vld [vmem:[%s2 + $0x6c] sm:$0xf]
      %v966 = vld [vmem:[%s2 + $0x70] sm:$0xf]
      %v967 = vld [vmem:[%s2 + $0x74] sm:$0xf]
      %v968 = vld [vmem:[%s2 + $0x78] sm:$0xf]
      %v969 = vld [vmem:[%s2 + $0x7c] sm:$0xf]
      %v970 = vld [vmem:[%s2 + $0x80] sm:$0xf]
      %v971 = vld [vmem:[%s2 + $0x84] sm:$0xf]
      %v972 = vld [vmem:[%s2 + $0x88] sm:$0xf]
      %v973 = vld [vmem:[%s2 + $0x8c] sm:$0xf]
      %v974 = vld [vmem:[%s2 + $0x90] sm:$0xf]
      %v975 = vld [vmem:[%s2 + $0x94] sm:$0xf]
      %v976 = vld [vmem:[%s2 + $0x98] sm:$0xf]
      %v977 = vld [vmem:[%s2 + $0x9c] sm:$0xf]
      %v978 = vld [vmem:[%s2 + $0xa0] sm:$0xf]
      %v979 = vld [vmem:[%s2 + $0xa4] sm:$0xf]
      %v980 = vld [vmem:[%s2 + $0xa8] sm:$0xf]
      %v981 = vld [vmem:[%s2 + $0xac] sm:$0xf]
      %v982 = vld [vmem:[%s2 + $0xb0] sm:$0xf]
      %v983 = vld [vmem:[%s2 + $0xb4] sm:$0xf]
      %v984 = vld [vmem:[%s2 + $0xb8] sm:$0xf]
      %v985 = vld [vmem:[%s2 + $0xbc] sm:$0xf]
      %v986 = vperm.slane %v223, 1
      %v1035 = vunpack.c.l.b16 %v938
      %v1036 = vunpack.c.l.b16 %v939
      %v1037 = vunpack.c.l.b16 %v940
      %v1038 = vunpack.c.l.b16 %v941
      %v1039 = vunpack.c.l.b16 %v942
      %v1040 = vunpack.c.l.b16 %v943
      %v1041 = vunpack.c.l.b16 %v944
      %v1042 = vunpack.c.l.b16 %v945
      %v1043 = vunpack.c.l.b16 %v946
      %v1044 = vunpack.c.l.b16 %v947
      %v1045 = vunpack.c.l.b16 %v948
      %v1046 = vunpack.c.l.b16 %v949
      %v1047 = vunpack.c.l.b16 %v950
      %v1048 = vunpack.c.l.b16 %v951
      %v1049 = vunpack.c.l.b16 %v952
      %v1050 = vunpack.c.l.b16 %v953
      %v1051 = vunpack.c.l.b16 %v954
      %v1052 = vunpack.c.l.b16 %v955
      %v1053 = vunpack.c.l.b16 %v956
      %v1054 = vunpack.c.l.b16 %v957
      %v1055 = vunpack.c.l.b16 %v958
      %v1056 = vunpack.c.l.b16 %v959
      %v1057 = vunpack.c.l.b16 %v960
      %v1058 = vunpack.c.l.b16 %v961
      %v1059 = vunpack.c.l.b16 %v962
      %v1060 = vunpack.c.l.b16 %v963
      %v1061 = vunpack.c.l.b16 %v964
      %v1062 = vunpack.c.l.b16 %v965
      %v1063 = vunpack.c.l.b16 %v966
      %v1064 = vunpack.c.l.b16 %v967
      %v1065 = vunpack.c.l.b16 %v968
      %v1066 = vunpack.c.l.b16 %v969
      %v1067 = vunpack.c.l.b16 %v970
      %v1068 = vunpack.c.l.b16 %v971
      %v1069 = vunpack.c.l.b16 %v972
      %v1070 = vunpack.c.l.b16 %v973
      %v1071 = vunpack.c.l.b16 %v974
      %v1072 = vunpack.c.l.b16 %v975
      %v1073 = vunpack.c.l.b16 %v976
      %v1074 = vunpack.c.l.b16 %v977
      %v1075 = vunpack.c.l.b16 %v978
      %v1076 = vunpack.c.l.b16 %v979
      %v1077 = vunpack.c.l.b16 %v980
      %v1078 = vunpack.c.l.b16 %v981
      %v1079 = vunpack.c.l.b16 %v982
      %v1080 = vunpack.c.l.b16 %v983
      %v1081 = vunpack.c.l.b16 %v984
      %v1082 = vunpack.c.l.b16 %v985
      %v1083 = vpack.c.b16 %v1036, %v1035
      %v1084 = vpack.c.b16 %v1038, %v1037
      %v1085 = vpack.c.b16 %v1040, %v1039
      %v1086 = vpack.c.b16 %v1042, %v1041
      %v1087 = vpack.c.b16 %v1044, %v1043
      %v1088 = vpack.c.b16 %v1046, %v1045
      %v1089 = vpack.c.b16 %v1048, %v1047
      %v1090 = vpack.c.b16 %v1050, %v1049
      %v1091 = vpack.c.b16 %v1052, %v1051
      %v1092 = vpack.c.b16 %v1054, %v1053
      %v1093 = vpack.c.b16 %v1056, %v1055
      %v1094 = vpack.c.b16 %v1058, %v1057
      %v1095 = vpack.c.b16 %v1060, %v1059
      %v1096 = vpack.c.b16 %v1062, %v1061
      %v1097 = vpack.c.b16 %v1064, %v1063
      %v1098 = vpack.c.b16 %v1066, %v1065
      %v1099 = vpack.c.b16 %v1068, %v1067
      %v1100 = vpack.c.b16 %v1070, %v1069
      %v1101 = vpack.c.b16 %v1072, %v1071
      %v1102 = vpack.c.b16 %v1074, %v1073
      %v1103 = vpack.c.b16 %v1076, %v1075
      %v1104 = vpack.c.b16 %v1078, %v1077
      %v1105 = vpack.c.b16 %v1080, %v1079
      %v1106 = vpack.c.b16 %v1082, %v1081
      %1131 = vmatpush.bf16.msra.mxu0 %v1090
      %1132 = vmatpush.bf16.msra.mxu0 %v1089
      %1133 = vmatpush.bf16.msra.mxu0 %v1088
      %1134 = vmatpush.bf16.msra.mxu0 %v1087
      %1135 = vmatpush.bf16.msra.mxu0 %v1086
      %1136 = vmatpush.bf16.msra.mxu0 %v1085
      %1137 = vmatpush.bf16.msra.mxu0 %v1084
      %1138 = vmatpush.bf16.msra.mxu0 %v1083
      %1139 = vmatmul.bf16.gmra.mxu0 %v890
      %v1140 = vpop.f32.mrf.mxu0
      %v1141 = vadd.f32 %v986, %v1140
      %v1142 = vpop.f32.mrf.mxu0
      %v1143 = vadd.f32 %v986, %v1142
      %1144 = vmatmul.bf16.gmra.mxu0 %v891
      %v1145 = vpop.f32.mrf.mxu0
      %v1146 = vadd.f32 %v986, %v1145
      %v1147 = vpop.f32.mrf.mxu0
      %v1148 = vadd.f32 %v986, %v1147
      %1149 = vmatmul.bf16.gmra.mxu0 %v892
      %v1150 = vpop.f32.mrf.mxu0
      %v1151 = vadd.f32 %v986, %v1150
      %v1152 = vpop.f32.mrf.mxu0
      %v1153 = vadd.f32 %v986, %v1152
      %1154 = vmatmul.bf16.gmra.mxu0 %v893
      %v1155 = vpop.f32.mrf.mxu0
      %v1156 = vadd.f32 %v986, %v1155
      %v1157 = vpop.f32.mrf.mxu0
      %v1158 = vadd.f32 %v986, %v1157
      %1159 = vmatmul.bf16.gmra.mxu0 %v894
      %v1160 = vpop.f32.mrf.mxu0
      %v1161 = vadd.f32 %v986, %v1160
      %v1162 = vpop.f32.mrf.mxu0
      %v1163 = vadd.f32 %v986, %v1162
      %1164 = vmatmul.bf16.gmra.mxu0 %v895
      %v1165 = vpop.f32.mrf.mxu0
      %v1166 = vadd.f32 %v986, %v1165
      %v1167 = vpop.f32.mrf.mxu0
      %v1168 = vadd.f32 %v986, %v1167
      %1169 = vmatmul.bf16.gmra.mxu0 %v896
      %v1170 = vpop.f32.mrf.mxu0
      %v1171 = vadd.f32 %v986, %v1170
      %v1172 = vpop.f32.mrf.mxu0
      %v1173 = vadd.f32 %v986, %v1172
      %1174 = vmatmul.bf16.gmra.mxu0 %v897
      %v1175 = vpop.f32.mrf.mxu0
      %v1176 = vadd.f32 %v986, %v1175
      %v1177 = vpop.f32.mrf.mxu0
      %v1178 = vadd.f32 %v986, %v1177
      %1179 = vdwg.mxu0
      %1180 = vmatpush.bf16.msra.mxu0 %v1098
      %1181 = vmatpush.bf16.msra.mxu0 %v1097
      %1182 = vmatpush.bf16.msra.mxu0 %v1096
      %1183 = vmatpush.bf16.msra.mxu0 %v1095
      %1184 = vmatpush.bf16.msra.mxu0 %v1094
      %1185 = vmatpush.bf16.msra.mxu0 %v1093
      %1186 = vmatpush.bf16.msra.mxu0 %v1092
      %1187 = vmatpush.bf16.msra.mxu0 %v1091
      %1188 = vmatmul.bf16.gmra.mxu0 %v818
      %v1189 = vpop.f32.mrf.mxu0
      %v1190 = vadd.f32 %v1141, %v1189
      %v1191 = vpop.f32.mrf.mxu0
      %v1192 = vadd.f32 %v1143, %v1191
      %1193 = vmatmul.bf16.gmra.mxu0 %v819
      %v1194 = vpop.f32.mrf.mxu0
      %v1195 = vadd.f32 %v1146, %v1194
      %v1196 = vpop.f32.mrf.mxu0
      %v1197 = vadd.f32 %v1148, %v1196
      %1198 = vmatmul.bf16.gmra.mxu0 %v820
      %v1199 = vpop.f32.mrf.mxu0
      %v1200 = vadd.f32 %v1151, %v1199
      %v1201 = vpop.f32.mrf.mxu0
      %v1202 = vadd.f32 %v1153, %v1201
      %1203 = vmatmul.bf16.gmra.mxu0 %v821
      %v1204 = vpop.f32.mrf.mxu0
      %v1205 = vadd.f32 %v1156, %v1204
      %v1206 = vpop.f32.mrf.mxu0
      %v1207 = vadd.f32 %v1158, %v1206
      %1208 = vmatmul.bf16.gmra.mxu0 %v822
      %v1209 = vpop.f32.mrf.mxu0
      %v1210 = vadd.f32 %v1161, %v1209
      %v1211 = vpop.f32.mrf.mxu0
      %v1212 = vadd.f32 %v1163, %v1211
      %1213 = vmatmul.bf16.gmra.mxu0 %v823
      %v1214 = vpop.f32.mrf.mxu0
      %v1215 = vadd.f32 %v1166, %v1214
      %v1216 = vpop.f32.mrf.mxu0
      %v1217 = vadd.f32 %v1168, %v1216
      %1218 = vmatmul.bf16.gmra.mxu0 %v824
      %v1219 = vpop.f32.mrf.mxu0
      %v1220 = vadd.f32 %v1171, %v1219
      %v1221 = vpop.f32.mrf.mxu0
      %v1222 = vadd.f32 %v1173, %v1221
      %1223 = vmatmul.bf16.gmra.mxu0 %v825
      %v1224 = vpop.f32.mrf.mxu0
      %v1225 = vadd.f32 %v1176, %v1224
      %v1226 = vpop.f32.mrf.mxu0
      %v1227 = vadd.f32 %v1178, %v1226
      %1228 = vdwg.mxu0
      %1229 = vmatpush.bf16.msra.mxu0 %v1106
      %1230 = vmatpush.bf16.msra.mxu0 %v1105
      %1231 = vmatpush.bf16.msra.mxu0 %v1104
      %1232 = vmatpush.bf16.msra.mxu0 %v1103
      %1233 = vmatpush.bf16.msra.mxu0 %v1102
      %1234 = vmatpush.bf16.msra.mxu0 %v1101
      %1235 = vmatpush.bf16.msra.mxu0 %v1100
      %1236 = vmatpush.bf16.msra.mxu0 %v1099
      %1237 = vmatmul.bf16.gmra.mxu0 %v922
      %v1238 = vpop.f32.mrf.mxu0
      %v1239 = vadd.f32 %v1190, %v1238
      %v1240 = vpop.f32.mrf.mxu0
      %v1241 = vadd.f32 %v1192, %v1240
      %1242 = vmatmul.bf16.gmra.mxu0 %v923
      %v1243 = vpop.f32.mrf.mxu0
      %v1244 = vadd.f32 %v1195, %v1243
      %v1245 = vpop.f32.mrf.mxu0
      %v1246 = vadd.f32 %v1197, %v1245
      %1247 = vmatmul.bf16.gmra.mxu0 %v924
      %v1248 = vpop.f32.mrf.mxu0
      %v1249 = vadd.f32 %v1200, %v1248
      %v1250 = vpop.f32.mrf.mxu0
      %v1251 = vadd.f32 %v1202, %v1250
      %1252 = vmatmul.bf16.gmra.mxu0 %v925
      %v1253 = vpop.f32.mrf.mxu0
      %v1254 = vadd.f32 %v1205, %v1253
      %v1255 = vpop.f32.mrf.mxu0
      %v1256 = vadd.f32 %v1207, %v1255
      %1257 = vmatmul.bf16.gmra.mxu0 %v926
      %v1258 = vpop.f32.mrf.mxu0
      %v1259 = vadd.f32 %v1210, %v1258
      %v1260 = vpop.f32.mrf.mxu0
      %v1261 = vadd.f32 %v1212, %v1260
      %1262 = vmatmul.bf16.gmra.mxu0 %v927
      %v1263 = vpop.f32.mrf.mxu0
      %v1264 = vadd.f32 %v1215, %v1263
      %v1265 = vpop.f32.mrf.mxu0
      %v1266 = vadd.f32 %v1217, %v1265
      %1267 = vmatmul.bf16.gmra.mxu0 %v928
      %v1268 = vpop.f32.mrf.mxu0
      %v1269 = vadd.f32 %v1220, %v1268
      %v1270 = vpop.f32.mrf.mxu0
      %v1271 = vadd.f32 %v1222, %v1270
      %1272 = vmatmul.bf16.gmra.mxu0 %v929
      %v1273 = vpop.f32.mrf.mxu0
      %v1274 = vadd.f32 %v1225, %v1273
      %v1275 = vpop.f32.mrf.mxu0
      %v1276 = vadd.f32 %v1227, %v1275
      %1277 = vdwg.mxu0
      %v1278 = vunpack.c.l.bf16 %v207
      %v1279 = vunpack.c.l.bf16 %v208
      %v1280 = vunpack.c.l.bf16 %v209
      %v1281 = vunpack.c.l.bf16 %v210
      %v1282 = vunpack.c.l.bf16 %v211
      %v1283 = vunpack.c.l.bf16 %v212
      %v1284 = vunpack.c.l.bf16 %v213
      %v1285 = vunpack.c.l.bf16 %v214
      %v1286 = vunpack.c.l.bf16 %v215
      %v1287 = vunpack.c.l.bf16 %v216
      %v1288 = vunpack.c.l.bf16 %v217
      %v1289 = vunpack.c.l.bf16 %v218
      %v1290 = vunpack.c.l.bf16 %v219
      %v1291 = vunpack.c.l.bf16 %v220
      %v1292 = vunpack.c.l.bf16 %v221
      %v1293 = vunpack.c.l.bf16 %v222
      %v1294 = vadd.f32 %v1239, %v1278
      %v1295 = vadd.f32 %v1241, %v1279
      %v1296 = vadd.f32 %v1244, %v1280
      %v1297 = vadd.f32 %v1246, %v1281
      %v1298 = vadd.f32 %v1249, %v1282
      %v1299 = vadd.f32 %v1251, %v1283
      %v1300 = vadd.f32 %v1254, %v1284
      %v1301 = vadd.f32 %v1256, %v1285
      %v1302 = vadd.f32 %v1259, %v1286
      %v1303 = vadd.f32 %v1261, %v1287
      %v1304 = vadd.f32 %v1264, %v1288
      %v1305 = vadd.f32 %v1266, %v1289
      %v1306 = vadd.f32 %v1269, %v1290
      %v1307 = vadd.f32 %v1271, %v1291
      %v1308 = vadd.f32 %v1274, %v1292
      %v1309 = vadd.f32 %v1276, %v1293
      %vm1310 = vcmp.ge.f32.partialorder %v1294, 0.0
      %vm1311 = vcmp.ge.f32.partialorder %v1295, 0.0
      %vm1312 = vcmp.ge.f32.partialorder %v1296, 0.0
      %vm1313 = vcmp.ge.f32.partialorder %v1297, 0.0
      %vm1314 = vcmp.ge.f32.partialorder %v1298, 0.0
      %vm1315 = vcmp.ge.f32.partialorder %v1299, 0.0
      %vm1316 = vcmp.ge.f32.partialorder %v1300, 0.0
      %vm1317 = vcmp.ge.f32.partialorder %v1301, 0.0
      %vm1318 = vcmp.ge.f32.partialorder %v1302, 0.0
      %vm1319 = vcmp.ge.f32.partialorder %v1303, 0.0
      %vm1320 = vcmp.ge.f32.partialorder %v1304, 0.0
      %vm1321 = vcmp.ge.f32.partialorder %v1305, 0.0
      %vm1322 = vcmp.ge.f32.partialorder %v1306, 0.0
      %vm1323 = vcmp.ge.f32.partialorder %v1307, 0.0
      %vm1324 = vcmp.ge.f32.partialorder %v1308, 0.0
      %vm1325 = vcmp.ge.f32.partialorder %v1309, 0.0
      %v1326 = vmul.f32 %v1294, 0.1
      %v1327 = vmul.f32 %v1295, 0.1
      %v1328 = vmul.f32 %v1296, 0.1
      %v1329 = vmul.f32 %v1297, 0.1
      %v1330 = vmul.f32 %v1298, 0.1
      %v1331 = vmul.f32 %v1299, 0.1
      %v1332 = vmul.f32 %v1300, 0.1
      %v1333 = vmul.f32 %v1301, 0.1
      %v1334 = vmul.f32 %v1302, 0.1
      %v1335 = vmul.f32 %v1303, 0.1
      %v1336 = vmul.f32 %v1304, 0.1
      %v1337 = vmul.f32 %v1305, 0.1
      %v1338 = vmul.f32 %v1306, 0.1
      %v1339 = vmul.f32 %v1307, 0.1
      %v1340 = vmul.f32 %v1308, 0.1
      %v1341 = vmul.f32 %v1309, 0.1
      %v1342 = vsel %vm1310, %v1294, %v1326
      %v1343 = vsel %vm1311, %v1295, %v1327
      %v1344 = vsel %vm1312, %v1296, %v1328
      %v1345 = vsel %vm1313, %v1297, %v1329
      %v1346 = vsel %vm1314, %v1298, %v1330
      %v1347 = vsel %vm1315, %v1299, %v1331
      %v1348 = vsel %vm1316, %v1300, %v1332
      %v1349 = vsel %vm1317, %v1301, %v1333
      %v1350 = vsel %vm1318, %v1302, %v1334
      %v1351 = vsel %vm1319, %v1303, %v1335
      %v1352 = vsel %vm1320, %v1304, %v1336
      %v1353 = vsel %vm1321, %v1305, %v1337
      %v1354 = vsel %vm1322, %v1306, %v1338
      %v1355 = vsel %vm1323, %v1307, %v1339
      %v1356 = vsel %vm1324, %v1308, %v1340
      %v1357 = vsel %vm1325, %v1309, %v1341
      %v1358 = vpack.c.bf16 %v1342, %v1342
      %v1359 = vpack.c.bf16 %v1343, %v1343
      %v1360 = vpack.c.bf16 %v1344, %v1344
      %v1361 = vpack.c.bf16 %v1345, %v1345
      %v1362 = vpack.c.bf16 %v1346, %v1346
      %v1363 = vpack.c.bf16 %v1347, %v1347
      %v1364 = vpack.c.bf16 %v1348, %v1348
      %v1365 = vpack.c.bf16 %v1349, %v1349
      %v1366 = vpack.c.bf16 %v1350, %v1350
      %v1367 = vpack.c.bf16 %v1351, %v1351
      %v1368 = vpack.c.bf16 %v1352, %v1352
      %v1369 = vpack.c.bf16 %v1353, %v1353
      %v1370 = vpack.c.bf16 %v1354, %v1354
      %v1371 = vpack.c.bf16 %v1355, %v1355
      %v1372 = vpack.c.bf16 %v1356, %v1356
      %v1373 = vpack.c.bf16 %v1357, %v1357
      %1374 = vst [vmem:[%s204] sm:$0xf] %v1358
      %1375 = vst [vmem:[%s204 + $0x4] sm:$0xf] %v1359
      %1376 = vst [vmem:[%s204 + $0x8] sm:$0xf] %v1360
      %1377 = vst [vmem:[%s204 + $0xc] sm:$0xf] %v1361
      %1378 = vst [vmem:[%s204 + $0x10] sm:$0xf] %v1362
      %1379 = vst [vmem:[%s204 + $0x14] sm:$0xf] %v1363
      %1380 = vst [vmem:[%s204 + $0x18] sm:$0xf] %v1364
      %1381 = vst [vmem:[%s204 + $0x1c] sm:$0xf] %v1365
      %1382 = vst [vmem:[%s204 + $0x20] sm:$0xf] %v1366
      %1383 = vst [vmem:[%s204 + $0x24] sm:$0xf] %v1367
      %1384 = vst [vmem:[%s204 + $0x28] sm:$0xf] %v1368
      %1385 = vst [vmem:[%s204 + $0x2c] sm:$0xf] %v1369
      %1386 = vst [vmem:[%s204 + $0x30] sm:$0xf] %v1370
      %1387 = vst [vmem:[%s204 + $0x34] sm:$0xf] %v1371
      %1388 = vst [vmem:[%s204 + $0x38] sm:$0xf] %v1372
      %1389 = vst [vmem:[%s204 + $0x3c] sm:$0xf] %v1373
      %s1390 = smul.u32 8, %s15
      %p1391 = scmp.lt.s32.totalorder %s1390, 15
      %s1392 = scalar_select %p1391, %s1390, 15
      %s1393 = smul.addr %s1392, 2
      %s1394 = smul.addr %s1393, 4
      %s1395 = scalar_lea.vmem %s4, %s1394
      // Predicated region
      $region37: #{basic_block_forward.1} parent=35 // pred_check
        %p1396 = pneg %p122
      $region38: #{basic_block_forward.1} parent=35 // pred_check_branch
        %1398 = sbr.rel (%p1396) target = $region40
      $region39: #{basic_block_forward.1} parent=35 // pred_region
        %s1399 = smul.u32 8, %s15
      $region40: #{basic_block_forward.1} parent=35 // pred_fallthru
        _
    $region36: #{basic_block_forward.1} parent=5 // pred_fallthru
      _
    %p1400 = scmp.le.s32.totalorder 2, %s10
    // Predicated region
    $region41: #{basic_block_forward.1} parent=5 // pred_check
      %p1401 = pneg %p1400
    $region42: #{basic_block_forward.1} parent=5 // pred_check_branch
      %1403 = sbr.rel (%p1401) target = $region44
    $region43: #{basic_block_forward.1} parent=5 // pred_region
      %s1404 = ssub.s32 %s10, 2
      // Predicated region
      $region45: #{basic_block_forward.1} parent=43 // pred_check
        %p1405 = pneg %p128
      $region46: #{basic_block_forward.1} parent=43 // pred_check_branch
        %1407 = sbr.rel (%p1405) target = $region48
      $region47: #{basic_block_forward.1} parent=43 // pred_region
        %s1408 = smul.u32 8, %s16
        %p1409 = scmp.lt.s32.totalorder %s1408, 15
        %s1410 = scalar_select %p1409, %s1408, 15
        %s1411 = smul.addr %s1410, 2
        %s1412 = smul.addr %s1411, 4
        %s1413 = scalar_lea.vmem %s4, %s1412
      $region48: #{basic_block_forward.1} parent=43 // pred_fallthru
        _
    $region44: #{basic_block_forward.1} parent=5 // pred_fallthru
      _
  $region6: #{basic_block_forward.1} parent=0 // loop_footer
    %s14 = sadd.s32 1, %s10
  $region7: #{basic_block_forward.1} parent=0 // loop_footer_branch
    %9 = sbr.rel target = $region3
  $region8: #{basic_block_forward.1} parent=0 // loop_exit
    _

</llo_original>
